<compile_context>
chip_gen: v7x
topology: tpu7x:2x2x1
jax: 0.10.0
libtpu: 0.0.40
codegen_flags: <defaults>
</compile_context>

<pallas_src>
import functools

import jax
import jax.numpy as jnp
from jax.experimental import pallas as pl
from jax.experimental.pallas import tpu as pltpu


# ---------------------------------------------------------------------------
# small helpers
# ---------------------------------------------------------------------------
def _round_up(x, m):
    return ((x + m - 1) // m) * m


def _pad_nodes(n):
    # Small graphs: one tile along the node axis. Large graphs: pad so the
    # aggregation tiles (tm=512, tk=1024) divide N_pad exactly.
    if n <= 1024:
        return _round_up(n, 128)
    return _round_up(n, 1024)


def _agg_tiles(n_pad, f_out_pad):
    # tn: collapse the j axis whenever the full output width fits (<=512) so
    # A_hat (the dominant HBM stream) is read exactly once per layer.
    if f_out_pad <= 512:
        tn = f_out_pad
    elif f_out_pad % 512 == 0:
        tn = 512
    elif f_out_pad % 256 == 0:
        tn = 256
    else:
        tn = 128
    if n_pad <= 1024:
        tm = tk = n_pad            # single tile along nodes
    else:
        tm, tk = 512, 1024         # big tiles -> few grid steps, ~85% HBM roofline regime
    return tm, tk, tn


def _vmem_limit(buffer_bytes):
    # buffer_bytes already includes double-buffer factors; add headroom.
    # Floor above the v5e 16 MiB scoped default, cap safely under v7x's 64 MiB.
    return int(min(max(buffer_bytes + (4 << 20), 20 << 20), 48 << 20))


# ---------------------------------------------------------------------------
# Pallas kernel 1: feature transform  XW = X @ W   (bf16 in, bf16 out, f32 acc)
# ---------------------------------------------------------------------------
def _xw_kernel(x_ref, w_ref, o_ref):
    o_ref[...] = jnp.dot(
        x_ref[...], w_ref[...], preferred_element_type=jnp.float32
    ).astype(o_ref.dtype)


def feature_transform(x_bf16, w_bf16):
    n_pad, f_in_pad = x_bf16.shape
    f_out_pad = w_bf16.shape[1]
    tm = n_pad if n_pad <= 1024 else 512
    grid = (n_pad // tm,)
    buf_bytes = 2 * (tm * f_in_pad * 2 + f_in_pad * f_out_pad * 2 + tm * f_out_pad * 2)
    return pl.pallas_call(
        _xw_kernel,
        out_shape=jax.ShapeDtypeStruct((n_pad, f_out_pad), jnp.bfloat16),
        grid_spec=pltpu.PrefetchScalarGridSpec(
            num_scalar_prefetch=0,
            grid=grid,
            in_specs=[
                pl.BlockSpec((tm, f_in_pad), lambda i: (i, 0)),
                pl.BlockSpec((f_in_pad, f_out_pad), lambda i: (0, 0)),
            ],
            out_specs=pl.BlockSpec((tm, f_out_pad), lambda i: (i, 0)),
        ),
        compiler_params=pltpu.CompilerParams(
            dimension_semantics=("parallel",),
            vmem_limit_bytes=_vmem_limit(buf_bytes),
        ),
        cost_estimate=pl.CostEstimate(
            flops=2 * n_pad * f_in_pad * f_out_pad,
            transcendentals=0,
            bytes_accessed=(n_pad * f_in_pad * 2 + f_in_pad * f_out_pad * 2
                            + n_pad * f_out_pad * 2),
        ),
    )(x_bf16, w_bf16)


# ---------------------------------------------------------------------------
# Pallas kernel 2: tiled aggregation  out = [relu](A_hat @ XW + b)
# ---------------------------------------------------------------------------
def _agg_kernel(a_ref, xw_ref, b_ref, o_ref, *maybe_acc,
                apply_relu: bool, resident_xw: bool):
    k = pl.program_id(2)
    # f32-output path: output block index (i,j) is constant over k, so the tile
    # stays resident and we accumulate straight into it (no scratch needed).
    acc_ref = maybe_acc[0] if maybe_acc else o_ref

    @pl.when(k == 0)
    def _init():
        acc_ref[...] = jnp.zeros_like(acc_ref)

    if resident_xw:
        # XW column block (n_pad, tn) is resident in VMEM; slice the k-th chunk.
        tk = a_ref.shape[1]
        start = pl.multiple_of(k * tk, tk)
        xw_blk = xw_ref[pl.ds(start, tk), :]
    else:
        xw_blk = xw_ref[...]

    acc_ref[...] += jnp.dot(a_ref[...], xw_blk, preferred_element_type=jnp.float32)

    @pl.when(k == pl.num_programs(2) - 1)
    def _finalize():
        h = acc_ref[...] + b_ref[...]          # bias applied once, in finalize only
        if apply_relu:
            h = jnp.maximum(h, 0.0)
        o_ref[...] = h.astype(o_ref.dtype)


def aggregate(a_bf16, xw_bf16, b_pad, *, apply_relu, out_dtype):
    n_pad = a_bf16.shape[0]
    f_out_pad = xw_bf16.shape[1]
    tm, tk, tn = _agg_tiles(n_pad, f_out_pad)
    grid = (n_pad // tm, f_out_pad // tn, n_pad // tk)

    out_size = jnp.dtype(out_dtype).itemsize
    # Keep the whole (n_pad, tn) XW column resident across the i,k loops when it
    # fits comfortably in VMEM (gate incl. double buffering; v7x-safe).
    resident_xw = (2 * n_pad * tn * 2) <= (16 << 20)
    use_scratch = jnp.dtype(out_dtype) != jnp.dtype(jnp.float32)

    if resident_xw:
        xw_spec = pl.BlockSpec((n_pad, tn), lambda i, j, k: (0, j))
        xw_buf = 2 * n_pad * tn * 2
    else:
        xw_spec = pl.BlockSpec((tk, tn), lambda i, j, k: (k, j))
        xw_buf = 2 * tk * tn * 2

    scratch = [pltpu.VMEM((tm, tn), jnp.float32)] if use_scratch else []

    buf_bytes = (2 * tm * tk * 2              # A_hat tiles (bf16, double-buffered)
                 + xw_buf                     # XW (resident column or streamed tile)
                 + 2 * 8 * tn * 4             # bias tile (sublane-padded)
                 + 2 * tm * tn * out_size     # output tiles
                 + (tm * tn * 4 if use_scratch else 0))

    n_i = n_pad // tm
    n_j = f_out_pad // tn
    bytes_accessed = (n_pad * n_pad * 2 * n_j                                   # A_hat stream
                      + n_pad * f_out_pad * 2 * (1 if resident_xw else n_i)      # XW
                      + f_out_pad * 4                                            # bias
                      + n_pad * f_out_pad * out_size)                            # output

    kernel = functools.partial(_agg_kernel, apply_relu=apply_relu,
                               resident_xw=resident_xw)
    return pl.pallas_call(
        kernel,
        out_shape=jax.ShapeDtypeStruct((n_pad, f_out_pad), out_dtype),
        grid_spec=pltpu.PrefetchScalarGridSpec(
            num_scalar_prefetch=0,
            grid=grid,
            in_specs=[
                pl.BlockSpec((tm, tk), lambda i, j, k: (i, k)),   # A_hat
                xw_spec,                                          # XW
                pl.BlockSpec((1, tn), lambda i, j, k: (0, j)),    # bias
            ],
            out_specs=pl.BlockSpec((tm, tn), lambda i, j, k: (i, j)),
            scratch_shapes=scratch,
        ),
        compiler_params=pltpu.CompilerParams(
            dimension_semantics=("parallel", "parallel", "arbitrary"),
            vmem_limit_bytes=_vmem_limit(buf_bytes),
        ),
        cost_estimate=pl.CostEstimate(
            flops=2 * n_pad * n_pad * f_out_pad,
            transcendentals=0,
            bytes_accessed=int(bytes_accessed),
        ),
    )(a_bf16, xw_bf16, b_pad)


# ---------------------------------------------------------------------------
# Fused adjacency build: padded + symmetric-normalized + bf16 in one step.
# Degrees come from an O(E) scatter-add (not a dense row-sum); per-edge weights
# are pre-normalized so only one N_pad^2 buffer is touched before the cast.
# ---------------------------------------------------------------------------
@functools.partial(jax.jit, static_argnums=(1, 2))
def build_normalized_adjacency(edge_index, num_nodes, n_pad):
    src = edge_index[0]
    dst = edge_index[1]
    ones = jnp.ones(src.shape, jnp.float32)
    # degree of (A + I): self loop + in-degree (message flows src -> dst),
    # duplicate edges sum (PyG behavior)
    deg = jnp.ones((num_nodes,), jnp.float32).at[dst].add(ones)
    dinv = jnp.where(deg > 0, jax.lax.rsqrt(deg), 0.0)
    w_edge = dinv[dst] * dinv[src]                    # per-edge normalized weight, O(E)
    diag = jnp.arange(num_nodes)
    a = jnp.zeros((n_pad, n_pad), jnp.float32)
    a = a.at[dst, src].add(w_edge)                    # A_hat off-diagonal entries
    a = a.at[diag, diag].add(dinv * dinv)             # normalized self loops
    return a.astype(jnp.bfloat16)                     # single bf16 N_pad^2 result


# ---------------------------------------------------------------------------
# GCN module (forward pass equivalent of the PyTorch reference)
# ---------------------------------------------------------------------------
class GCN:
    def __init__(self, in_channels, hid_channels, num_unit,
                 dropout=0.0, dropedge=0.0, batch_norm=False, key=None):
        self.num_unit = num_unit
        self.dropout = dropout      # TODO(synk): F.dropout with p>0 / training not applied
        self.dropedge = dropedge    # TODO(synk): dropout_adj with p>0 not applied
        self.batch_norm = batch_norm  # TODO(synk): BatchNorm layers exist but default off
        self.in_channels = in_channels
        self.hid_channels = hid_channels
        key = key if key is not None else jax.random.PRNGKey(0)
        dims = [(in_channels, hid_channels)] + [(hid_channels, hid_channels)] * num_unit
        # weights stored padded to (128k, 128k) and pre-cast to bf16 once (MXU operands);
        # biases padded to (1, F_out_pad) in f32 (zero, like PyG reset).
        self.weights_bf16 = []
        self.biases = []
        for fi, fo in dims:
            key, wk = jax.random.split(key)
            scale = (6.0 / (fi + fo)) ** 0.5  # glorot
            w = jax.random.uniform(wk, (fi, fo), jnp.float32, -scale, scale)
            fi_pad, fo_pad = _round_up(fi, 128), _round_up(fo, 128)
            w_pad = jnp.zeros((fi_pad, fo_pad), jnp.float32).at[:fi, :fo].set(w)
            self.weights_bf16.append(w_pad.astype(jnp.bfloat16))
            self.biases.append(jnp.zeros((1, fo_pad), jnp.float32))

    def __call__(self, x, edge_index, *args):
        n, f_in = x.shape
        n_pad = _pad_nodes(n)
        f_in_pad = _round_up(f_in, 128)

        # fused build of padded / normalized / bf16 A_hat, reused by every layer
        a_pad = build_normalized_adjacency(edge_index, n, n_pad)

        h = jnp.zeros((n_pad, f_in_pad), jnp.bfloat16).at[:n, :f_in].set(
            x.astype(jnp.bfloat16))

        num_layers = len(self.weights_bf16)
        out = None
        for i in range(num_layers):
            is_last = (i == num_layers - 1)
            xw = feature_transform(h, self.weights_bf16[i])
            out = aggregate(a_pad, xw, self.biases[i],
                            apply_relu=not is_last,
                            out_dtype=jnp.float32 if is_last else jnp.bfloat16)
            h = out   # hidden layers already emit bf16 -> no extra cast pass

        out = out[:n, :self.hid_channels]
        return (out, args[1])


# ---------------------------------------------------------------------------
if __name__ == "__main__":
    key = jax.random.PRNGKey(0)
    k_x, k_src, k_dst, k_param = jax.random.split(key, 4)

    num_nodes = 16
    in_channels = 4
    hid_channels = 32
    num_unit = 2
    num_edges = 40

    x = jax.random.normal(k_x, (num_nodes, in_channels), jnp.float32)
    src = jax.random.randint(k_src, (num_edges,), 0, num_nodes)
    dst = jax.random.randint(k_dst, (num_edges,), 0, num_nodes)
    edge_index = jnp.stack([src, dst], axis=0)

    model = GCN(in_channels, hid_channels, num_unit, key=k_param)

    # forward takes *args and returns args[1]; pass two dummy extras like the reference usage
    dummy0 = jnp.zeros((1,), jnp.float32)
    dummy1 = jnp.arange(num_nodes, dtype=jnp.int32)

    out, passthrough = model(x, edge_index, dummy0, dummy1)
    jax.block_until_ready(out)
    jax.block_until_ready(passthrough)

    assert out.shape == (num_nodes, hid_channels)
    assert out.dtype == jnp.float32
    assert passthrough.shape == (num_nodes,)
    print("KERNEL_OK")
</pallas_src>

<mosaic_0001>
module attributes {stable_mosaic.version = 11 : i64} {
  func.func private @main(%arg0: i32) attributes {dimension_semantics = [#tpu.dimension_semantics<core_parallel>], iteration_bounds = array<i64: 2>, tpu.core_type = #tpu.core_type<sc_scalar_subcore>, window_params = []} {
    return
  }
}

module attributes {stable_mosaic.version = 11 : i64} {
  func.func private @main(%arg0: i32) attributes {dimension_semantics = [#tpu.dimension_semantics<core_parallel>], iteration_bounds = array<i64: 2>, tpu.core_type = #tpu.core_type<sc_scalar_subcore>, window_params = []} {
    return
  }
}

</mosaic_0001>

<llo_original>
// kernel: mul.2
$region0: #{mul.2}
  #allocation0 [shape = 's32[1]{0}', space=sflag, size = 0x4, scoped, tag = 'scoped memory for mul.2']
  %s0 = inlined_call_operand.vmem [shape: f32[40], index: 0, kind: input, shape index: {}]
  %s1 = inlined_call_operand.vmem [shape: f32[40], index: 1, kind: input, shape index: {}]
  %s2 = inlined_call_operand.vmem [shape: f32[40], index: 2, kind: output, shape index: {}]
  %v3 = vld [vmem:[%s0] sm:$0x1]
  %v4 = vld [vmem:[%s1] sm:$0x1]
  %5 = xla_tuple %v3, %v4
  %6 = xla_tuple %5
  %v7 = vmul.f32 %v3, %v4
  %8 = xla_tuple %v7
  %9 = vst [vmem:[%s2] sm:$0x1] %v7

</llo_original>
